<compile_context>
chip_gen: v5e
topology: v5e:2x2
jax: 0.10.0
libtpu: 0.0.40
codegen_flags: <defaults>
</compile_context>

<pallas_src>
import jax
import jax.numpy as jnp
from jax.experimental import pallas as pl
from jax.experimental.pallas import tpu as pltpu


def _sigmoid_mul_kernel(gate_ref, x_ref, o_ref):
    # gate_ref: (BR, 1)   x_ref / o_ref: (BR, BS)
    # Sigmoid in f32 (tiny (BR,1) block, goes to the EUP); multiply in the
    # input dtype so the bulk operand is never upcast (bf16 stays bf16 on
    # v6e/v7x; for f32 inputs this is a no-op).
    g = jax.nn.sigmoid(gate_ref[...].astype(jnp.float32)).astype(x_ref.dtype)
    o_ref[...] = x_ref[...] * g


def _largest_aligned_divisor(dim, unit, cap):
    """Largest t <= cap with t % unit == 0 and dim % t == 0; else dim itself."""
    if dim % unit != 0:
        return dim
    t = min(cap, dim)
    t -= t % unit
    while t >= unit:
        if dim % t == 0:
            return t
        t -= unit
    return dim


def sigmoid_mul(x35, x31):
    """x35: (N, C, 1, 1) gate, x31: (N, C, H, W). Returns x31 * sigmoid(x35)."""
    N, C, H, W = x31.shape
    assert x35.shape == (N, C, 1, 1)

    rows = N * C
    spatial = H * W
    x_flat = x31.reshape(rows, spatial)
    g_flat = x35.reshape(rows, 1)

    itemsize = jnp.dtype(x31.dtype).itemsize
    # Sublane packing unit: 8 for f32, 16 for bf16, 32 for int8.
    sublane = max(8, 32 // max(itemsize, 1))

    # Lane-dense spatial tile: multiple of 128 that divides H*W, capped at 8192
    # lanes; otherwise fall back to the full spatial extent (whole-dim block is
    # always legal).
    bs = _largest_aligned_divisor(spatial, 128, 8192)

    # Row tile sized so one x tile is ~2 MiB: with double-buffered in + out
    # that is well under the default scoped VMEM limit on every generation
    # (including v7x's 64 MiB physical VMEM).
    target_elems = (2 * 1024 * 1024) // itemsize
    row_cap = max(sublane, target_elems // bs)
    br = _largest_aligned_divisor(rows, sublane, row_cap)

    grid = (rows // br, spatial // bs)

    out_flat = pl.pallas_call(
        _sigmoid_mul_kernel,
        out_shape=jax.ShapeDtypeStruct((rows, spatial), x31.dtype),
        grid=grid,
        in_specs=[
            pl.BlockSpec((br, 1), lambda i, j: (i, 0)),     # gate: per-row tile
            pl.BlockSpec((br, bs), lambda i, j: (i, j)),    # x tile
        ],
        out_specs=pl.BlockSpec((br, bs), lambda i, j: (i, j)),
        compiler_params=pltpu.CompilerParams(
            # Pure elementwise: every tile is independent -> both axes parallel
            # (lets v7x shard the grid across its two TensorCores; harmless on
            # single-TC v5e/v6e).
            dimension_semantics=("parallel", "parallel"),
        ),
    )(g_flat, x_flat)

    return out_flat.reshape(N, C, H, W)


if __name__ == "__main__":
    key = jax.random.PRNGKey(0)
    k1, k2 = jax.random.split(key)

    # Small shapes consistent with the module's (N, C, H, W) / (N, C, 1, 1) forward.
    N, C, H, W = 2, 4, 16, 16
    x31 = jax.random.normal(k1, (N, C, H, W), dtype=jnp.float32)
    x35 = jax.random.normal(k2, (N, C, 1, 1), dtype=jnp.float32)

    out = sigmoid_mul(x35, x31)
    jax.block_until_ready(out)

    # Reference check in plain JAX.
    ref = x31 * jax.nn.sigmoid(x35)
    assert out.shape == (N, C, H, W)
    assert jnp.allclose(out, ref, atol=1e-6, rtol=1e-6)

    print("KERNEL_OK")
</pallas_src>

<mosaic_0001>
module attributes {stable_mosaic.version = 11 : i64} {
  func.func @_sigmoid_mul_kernel(%arg0: i32, %arg1: i32, %arg2: memref<8x1xf32, #tpu.memory_space<vmem>>, %arg3: memref<8x256xf32, #tpu.memory_space<vmem>>, %arg4: memref<8x256xf32, #tpu.memory_space<vmem>>) attributes {dimension_semantics = [#tpu.dimension_semantics<parallel>, #tpu.dimension_semantics<parallel>], iteration_bounds = array<i64: 1, 1>, scalar_prefetch = 0 : i64, scratch_operands = 0 : i64, tpu.core_type = #tpu.core_type<tc>, window_params = [{transform_indices = @transform_0, window_bounds = array<i64: 8, 1>}, {transform_indices = @transform_1, window_bounds = array<i64: 8, 256>}, {transform_indices = @transform_2, window_bounds = array<i64: 8, 256>}]} {
    %c0 = arith.constant 0 : index
    %c0_0 = arith.constant 0 : index
    %0 = vector.load %arg2[%c0, %c0_0] : memref<8x1xf32, #tpu.memory_space<vmem>>, vector<8x1xf32>
    %1 = arith.negf %0 : vector<8x1xf32>
    %2 = math.exp %1 : vector<8x1xf32>
    %cst = arith.constant 1.000000e+00 : f32
    %3 = vector.broadcast %cst : f32 to vector<8x1xf32>
    %4 = arith.addf %3, %2 : vector<8x1xf32>
    %5 = arith.divf %3, %4 : vector<8x1xf32>
    %c0_1 = arith.constant 0 : index
    %c0_2 = arith.constant 0 : index
    %6 = vector.load %arg3[%c0_1, %c0_2] : memref<8x256xf32, #tpu.memory_space<vmem>>, vector<8x256xf32>
    %7 = vector.broadcast %5 : vector<8x1xf32> to vector<8x256xf32>
    %8 = arith.mulf %6, %7 : vector<8x256xf32>
    %c0_3 = arith.constant 0 : index
    %c0_4 = arith.constant 0 : index
    %9 = vector.load %arg4[%c0_3, %c0_4] : memref<8x256xf32, #tpu.memory_space<vmem>>, vector<8x256xf32>
    tpu.vector_store %arg4[%c0_3, %c0_4], %8 {strides = array<i32>} : memref<8x256xf32, #tpu.memory_space<vmem>>, vector<8x256xf32>,
    return
  }
  func.func @transform_0(%arg0: i32, %arg1: i32) -> (i32, i32) {
    %c0_i32 = arith.constant 0 : i32
    %c0_i32_0 = arith.constant 0 : i32
    return %arg0, %c0_i32 : i32, i32
  }
  func.func @transform_1(%arg0: i32, %arg1: i32) -> (i32, i32) {
    %c0_i32 = arith.constant 0 : i32
    return %arg0, %arg1 : i32, i32
  }
  func.func @transform_2(%arg0: i32, %arg1: i32) -> (i32, i32) {
    %c0_i32 = arith.constant 0 : i32
    return %arg0, %arg1 : i32, i32
  }
}

</mosaic_0001>

<llo_original>
// kernel: tpu_custom_call.1
$region0: #{tpu_custom_call.1}
  #allocation0 [shape = 'u32[]', space=smem, size = 0x4, offset = 0x4, fixed_abs, tag = 'smem constant byte address 0x4 - core index']
  #allocation1 [shape = 'u32[72,128]{1,0:T(1,128)}', space=vmem, size = 0x9000, scoped, tag = 'internal scratch']
  %s0 = inlined_call_operand.vmem [shape: f32[8,1], index: 0, kind: input, shape index: {}]
  %s1 = inlined_call_operand.hbm [shape: f32[8,256], index: 1, kind: input, shape index: {}]
  %s2 = inlined_call_operand.hbm [shape: f32[8,256], index: 2, kind: output, shape index: {}]
  %s3 = sld [smem:[#allocation0]]
  $region22: #{tpu_custom_call.1} parent=0
    _
  %s5 = ssub.s32 1, %s3
  %s6 = scalar_select 0, %s5, %s3
  $region1: #{tpu_custom_call.1} parent=0
    #allocation2 [shape = 'u8[8192]{0}', space=vmem, size = 0x2000, scoped, tag = 'input window, operand 1, single buffered']
    #allocation3 [shape = 's32[1]{0}', space=sflag, size = 0x4, scoped, tag = 'scoped memory for tpu_custom_call.1']
    #allocation4 [shape = 's32[1]{0}', space=sflag, size = 0x4, scoped, tag = 'scoped memory for tpu_custom_call.1']
    #allocation5 [shape = 'u8[8192]{0}', space=vmem, size = 0x2000, scoped, tag = 'output window, operand 0, single buffered']
    %7 = vsyncpa [#allocation3], 0
    %8 = vsyncpa [#allocation4], 0
    // Predicated region
    $region2: #{tpu_custom_call.1} parent=1 // pred_check
      _
    $region3: #{tpu_custom_call.1} parent=1 // pred_check_branch
      %10 = sbr.rel (0) target = $region5
    $region4: #{tpu_custom_call.1} parent=1 // pred_region
      _
    $region5: #{tpu_custom_call.1} parent=1 // pred_fallthru
      _
    // Predicated region
    $region6: #{tpu_custom_call.1} parent=1 // pred_check
      _
    $region7: #{tpu_custom_call.1} parent=1 // pred_check_branch
      %12 = sbr.rel (0) target = $region9
    $region8: #{tpu_custom_call.1} parent=1 // pred_region
      %14 = vsyncadd [#allocation3], 0
      %s16 = sshll.u32 %s1, 4
      %s17 = int_to_ptr.hbm [resolvable:$true] %s16
      %s18 = sshll.u32 [#allocation2], 4
      %s19 = int_to_ptr.vmem [resolvable:$true] %s18
      %21 = dma.hbm_to_vmem [thread:$0]  %s17, 256, %s19, [#allocation3]
    $region9: #{tpu_custom_call.1} parent=1 // pred_fallthru
      _
    // Predicated region
    $region10: #{tpu_custom_call.1} parent=1 // pred_check
      _
    $region11: #{tpu_custom_call.1} parent=1 // pred_check_branch
      %23 = sbr.rel (0) target = $region13
    $region12: #{tpu_custom_call.1} parent=1 // pred_region
      %25 = dma.done [#allocation3], 256
    $region13: #{tpu_custom_call.1} parent=1 // pred_fallthru
      _
    %v26 = vld [vmem:[%s0] sm:$0xff]
    %v27 = vxor.u32 %v26, 2147483648
    %v28 = vmul.f32 %v27, 1.442695
    %v29 = vpow.pop %v28
    %v30 = vadd.f32 %v29, 1.0
    %v31 = vrcp.pop %v30
    %v32 = vmul.f32 %v30, %v31
    %v33 = vsub.f32 1.0, %v32
    %v34 = vmul.f32 %v31, %v33
    %v35 = vadd.f32 %v31, %v34
    %vm36 = vweird.f32 %v30
    %vm37 = vweird.f32 %v31
    %vm38 = vmor %vm36, %vm37
    %v39 = vsel %vm38, %v31, %v35
    %v40 = vand.u32 2147483647, %v30
    %vm41 = vcmp.eq.f32.partialorder %v40, 8.507059e+37
    %v42 = vand.u32 %v30, 2147483648
    %v43 = vor.u32 1.1754944e-38, %v42
    %v44 = vsel %vm41, %v43, %v39
    %v45 = vmul.f32 1.0, %v44
    %v46 = vld [vmem:[#allocation2] sm:$0xff]
    %v47 = vld [vmem:[#allocation2 + $0x8] sm:$0xff]
    %49 = vset.pattern.permute.xlu0 0
    %50 = vperm.xlu0 %49, %v45
    %v51 = vpop.permute.xlu0 %50
    %v53 = vmul.f32 %v46, %v51
    %v54 = vmul.f32 %v47, %v51
    %55 = vst [vmem:[#allocation5] sm:$0xff] %v53
    %56 = vst [vmem:[#allocation5 + $0x8] sm:$0xff] %v54
    // Predicated region
    $region14: #{tpu_custom_call.1} parent=1 // pred_check
      _
    $region15: #{tpu_custom_call.1} parent=1 // pred_check_branch
      %58 = sbr.rel (0) target = $region17
    $region16: #{tpu_custom_call.1} parent=1 // pred_region
      %60 = vsyncadd [#allocation4], 0
      %s62 = sshll.u32 [#allocation5], 4
      %s63 = int_to_ptr.vmem [resolvable:$true] %s62
      %s64 = sshll.u32 %s2, 4
      %s65 = int_to_ptr.hbm [resolvable:$true] %s64
      %67 = dma.vmem_to_hbm [thread:$0]  %s63, 256, %s65, [#allocation4]
    $region17: #{tpu_custom_call.1} parent=1 // pred_fallthru
      _
    // Predicated region
    $region18: #{tpu_custom_call.1} parent=1 // pred_check
      _
    $region19: #{tpu_custom_call.1} parent=1 // pred_check_branch
      %69 = sbr.rel (0) target = $region21
    $region20: #{tpu_custom_call.1} parent=1 // pred_region
      %71 = dma.done [#allocation4], 256
    $region21: #{tpu_custom_call.1} parent=1 // pred_fallthru
      _
    %72 = vsyncpa [#allocation3], 1
    %73 = vsyncpa [#allocation4], 1

</llo_original>
